<compile_context>
chip_gen: v7x
topology: tpu7x:2x2x1
jax: 0.10.0
libtpu: 0.0.40
codegen_flags: <defaults>
</compile_context>

<pallas_src>
import jax
import jax.numpy as jnp
from jax.experimental import pallas as pl
from jax.experimental.pallas import tpu as pltpu

BN_EPS = 1e-5


def _round_up(x, m):
    return (x + m - 1) // m * m


# --------------------------- stage 1: tiled FC pass ---------------------------
def _fc_stage_kernel(x_ref, w1_ref, b1_ref, w2_ref, b2_ref, z_ref):
    # grad_reverse(x, beta) is the identity in the forward pass (backward-only op).
    h = jnp.dot(x_ref[...], w1_ref[...], preferred_element_type=jnp.float32)
    h = jnp.maximum(h + b1_ref[...], 0.0)                       # (tile, H_PAD) f32
    z_ref[...] = (jnp.dot(h, w2_ref[...], preferred_element_type=jnp.float32)
                  + b2_ref[...])                                # (tile, 2) f32


# ---------------- stage 2: batch-coupled BN + ReLU + (log)softmax -------------
def _bn_softmax_kernel(z_ref, gamma_ref, beta_ref, ls_ref, sm_ref):
    z = z_ref[...]                                              # (N, 2) f32
    # BatchNorm1d(2), training mode: per-feature batch mean / biased variance.
    mean = jnp.mean(z, axis=0, keepdims=True)
    var = jnp.mean((z - mean) * (z - mean), axis=0, keepdims=True)
    z_bn = (z - mean) * jax.lax.rsqrt(var + BN_EPS) * gamma_ref[...] + beta_ref[...]
    a = jnp.maximum(z_bn, 0.0)
    # Numerically stable softmax / log_softmax over the class dim (dim=1).
    m = jnp.max(a, axis=-1, keepdims=True)
    e = jnp.exp(a - m)
    s = jnp.sum(e, axis=-1, keepdims=True)
    sm_ref[...] = e * pl.reciprocal(s)          # exact reciprocal (EUP slot)
    ls_ref[...] = (a - m) - jnp.log(s)


def d_cls_inst_forward(x, w1, b1, w2, b2, gamma, beta_p, *, tile_n=512, use_bf16=True):
    """x: (N, fc_size) f32.  w1: (fc, 100), b1: (1, 100), w2: (100, 2), b2/gamma/beta: (1, 2).
    Returns (log_softmax, softmax), each (N, 2) f32."""
    assert tile_n % 8 == 0
    n, fc = x.shape
    hidden, out = w2.shape

    # ---- pad hidden 100 -> 128 (zero pad: ReLU(0)=0 and zero w2 rows keep it exact) ----
    h_pad = _round_up(hidden, 128)
    if h_pad != hidden:
        w1 = jnp.pad(w1, ((0, 0), (0, h_pad - hidden)))
        b1 = jnp.pad(b1, ((0, 0), (0, h_pad - hidden)))
        w2 = jnp.pad(w2, ((0, h_pad - hidden), (0, 0)))

    # ---- bf16 activations/weights for the fc1 matmul (f32 accumulation in-kernel) ----
    mm_dtype = jnp.bfloat16 if use_bf16 else jnp.float32
    x_in = x.astype(mm_dtype)
    w1_in = w1.astype(mm_dtype)
    b1 = b1.astype(jnp.float32)
    w2 = w2.astype(jnp.float32)
    b2 = b2.astype(jnp.float32)

    # ---- batch tiling ----
    tile = min(tile_n, _round_up(n, 8))
    n_pad = _round_up(n, tile)
    if n_pad != n:
        x_in = jnp.pad(x_in, ((0, n_pad - n), (0, 0)))
    grid = (n_pad // tile,)

    x_bytes = 2 if use_bf16 else 4
    # Tile footprint: double-buffered x and z blocks, resident (padded) weights, h scratch.
    footprint = (2 * tile * fc * x_bytes
                 + 2 * tile * out * 4
                 + fc * h_pad * x_bytes
                 + (h_pad + h_pad * out + out) * 4
                 + tile * h_pad * 4)
    vmem_limit = int(max(2 * footprint, 16 * 1024 * 1024))

    z_pad = pl.pallas_call(
        _fc_stage_kernel,
        out_shape=jax.ShapeDtypeStruct((n_pad, out), jnp.float32),
        grid_spec=pltpu.PrefetchScalarGridSpec(
            num_scalar_prefetch=0,
            grid=grid,
            in_specs=[
                pl.BlockSpec((tile, fc), lambda i: (i, 0)),      # x: streamed / pipelined
                pl.BlockSpec((fc, h_pad), lambda i: (0, 0)),     # w1: resident
                pl.BlockSpec((1, h_pad), lambda i: (0, 0)),      # b1: resident
                pl.BlockSpec((h_pad, out), lambda i: (0, 0)),    # w2: resident
                pl.BlockSpec((1, out), lambda i: (0, 0)),        # b2: resident
            ],
            out_specs=pl.BlockSpec((tile, out), lambda i: (i, 0)),
        ),
        compiler_params=pltpu.CompilerParams(
            dimension_semantics=("parallel",),   # shard batch tiles across TCs (v7x)
            vmem_limit_bytes=vmem_limit,
        ),
        cost_estimate=pl.CostEstimate(
            flops=2 * n_pad * fc * h_pad + 2 * n_pad * h_pad * out,
            transcendentals=0,
            bytes_accessed=(n_pad * fc * x_bytes
                            + fc * h_pad * x_bytes
                            + n_pad * out * 4),
        ),
    )(x_in, w1_in, b1, w2, b2)

    z = z_pad[:n] if n_pad != n else z_pad

    # ---- tiny tail: BN needs full-batch statistics, so run on the whole (N, 2) ----
    vmem = pl.BlockSpec(memory_space=pltpu.MemorySpace.VMEM)
    log_sm, sm = pl.pallas_call(
        _bn_softmax_kernel,
        out_shape=(jax.ShapeDtypeStruct((n, out), jnp.float32),
                   jax.ShapeDtypeStruct((n, out), jnp.float32)),
        in_specs=[vmem, vmem, vmem],
        out_specs=(vmem, vmem),
    )(z, gamma.astype(jnp.float32), beta_p.astype(jnp.float32))
    return log_sm, sm


def _reference(x, w1, b1, w2, b2, gamma, beta_p, use_bf16=True):
    # Mirrors the kernel's dtype policy (bf16 matmul inputs, f32 accumulation) so the
    # comparison isolates kernel correctness from the (intentional) bf16 rounding.
    if use_bf16:
        xm, w1m = x.astype(jnp.bfloat16), w1.astype(jnp.bfloat16)
    else:
        xm, w1m = x, w1
    h = jnp.maximum(jnp.dot(xm, w1m, preferred_element_type=jnp.float32) + b1, 0.0)
    z = jnp.dot(h, w2, preferred_element_type=jnp.float32) + b2
    mean = jnp.mean(z, axis=0, keepdims=True)
    var = jnp.mean((z - mean) ** 2, axis=0, keepdims=True)
    a = jnp.maximum((z - mean) * jax.lax.rsqrt(var + BN_EPS) * gamma + beta_p, 0.0)
    return jax.nn.log_softmax(a, axis=-1), jax.nn.softmax(a, axis=-1)


if __name__ == "__main__":
    # Small deterministic setup (module default fc_size=2048 shrunk; tile_n=128 -> grid=(2,)).
    N, FC_SIZE, HIDDEN, OUT = 256, 256, 100, 2

    key = jax.random.PRNGKey(0)
    kx, k1, k2, k3, k4 = jax.random.split(key, 5)

    x = jax.random.normal(kx, (N, FC_SIZE), dtype=jnp.float32)

    # PyTorch nn.Linear-style uniform init, stored transposed as (in, out).
    lim1 = 1.0 / (FC_SIZE ** 0.5)
    w1 = jax.random.uniform(k1, (FC_SIZE, HIDDEN), jnp.float32, -lim1, lim1)
    b1 = jax.random.uniform(k2, (1, HIDDEN), jnp.float32, -lim1, lim1)
    lim2 = 1.0 / (HIDDEN ** 0.5)
    w2 = jax.random.uniform(k3, (HIDDEN, OUT), jnp.float32, -lim2, lim2)
    b2 = jax.random.uniform(k4, (1, OUT), jnp.float32, -lim2, lim2)

    # BatchNorm1d(2) affine params at default init.
    gamma = jnp.ones((1, OUT), jnp.float32)
    beta_p = jnp.zeros((1, OUT), jnp.float32)

    log_sm, sm = d_cls_inst_forward(x, w1, b1, w2, b2, gamma, beta_p, tile_n=128)
    jax.block_until_ready((log_sm, sm))

    ref_ls, ref_sm = _reference(x, w1, b1, w2, b2, gamma, beta_p)
    assert jnp.allclose(log_sm, ref_ls, atol=1e-4, rtol=1e-4), "log_softmax mismatch"
    assert jnp.allclose(sm, ref_sm, atol=1e-4, rtol=1e-4), "softmax mismatch"

    print("KERNEL_OK")
</pallas_src>

<mosaic_0001>
module attributes {stable_mosaic.version = 11 : i64} {
  func.func @_fc_stage_kernel(%arg0: i32, %arg1: memref<128x256xbf16, #tpu.memory_space<vmem>>, %arg2: memref<256x128xbf16, #tpu.memory_space<vmem>>, %arg3: memref<1x128xf32, #tpu.memory_space<vmem>>, %arg4: memref<128x2xf32, #tpu.memory_space<vmem>>, %arg5: memref<1x2xf32, #tpu.memory_space<vmem>>, %arg6: memref<128x2xf32, #tpu.memory_space<vmem>>) attributes {dimension_semantics = [#tpu.dimension_semantics<parallel>], iteration_bounds = array<i64: 2>, scalar_prefetch = 0 : i64, scratch_operands = 0 : i64, tpu.core_type = #tpu.core_type<tc>, window_params = [{transform_indices = @transform_0, window_bounds = array<i64: 128, 256>}, {pipeline_mode = #tpu.pipeline_mode<synchronous>, transform_indices = @transform_1, window_bounds = array<i64: 256, 128>}, {pipeline_mode = #tpu.pipeline_mode<synchronous>, transform_indices = @transform_2, window_bounds = array<i64: 1, 128>}, {pipeline_mode = #tpu.pipeline_mode<synchronous>, transform_indices = @transform_3, window_bounds = array<i64: 128, 2>}, {pipeline_mode = #tpu.pipeline_mode<synchronous>, transform_indices = @transform_4, window_bounds = array<i64: 1, 2>}, {transform_indices = @transform_5, window_bounds = array<i64: 128, 2>}]} {
    %c0 = arith.constant 0 : index
    %c0_0 = arith.constant 0 : index
    %0 = vector.load %arg1[%c0, %c0_0] : memref<128x256xbf16, #tpu.memory_space<vmem>>, vector<128x256xbf16>
    %c0_1 = arith.constant 0 : index
    %c0_2 = arith.constant 0 : index
    %1 = vector.load %arg2[%c0_1, %c0_2] : memref<256x128xbf16, #tpu.memory_space<vmem>>, vector<256x128xbf16>
    %cst = arith.constant dense<0.000000e+00> : vector<128x128xf32>
    %2 = tpu.matmul %0, %1, %cst {dimension_numbers = #tpu.dot_dimension_numbers<[1], [0], [0], [1], [0, 0, 1, 1], [], []>} : vector<128x256xbf16>, vector<256x128xbf16>, vector<128x128xf32> -> vector<128x128xf32>
    %c0_3 = arith.constant 0 : index
    %c0_4 = arith.constant 0 : index
    %3 = vector.load %arg3[%c0_3, %c0_4] : memref<1x128xf32, #tpu.memory_space<vmem>>, vector<1x128xf32>
    %4 = vector.broadcast %3 : vector<1x128xf32> to vector<128x128xf32>
    %5 = arith.addf %2, %4 : vector<128x128xf32>
    %cst_5 = arith.constant 0.000000e+00 : f32
    %6 = vector.broadcast %cst_5 : f32 to vector<128x128xf32>
    %7 = arith.maximumf %5, %6 : vector<128x128xf32>
    %c0_6 = arith.constant 0 : index
    %c0_7 = arith.constant 0 : index
    %8 = vector.load %arg4[%c0_6, %c0_7] : memref<128x2xf32, #tpu.memory_space<vmem>>, vector<128x2xf32>
    %cst_8 = arith.constant dense<0.000000e+00> : vector<128x2xf32>
    %9 = tpu.matmul %7, %8, %cst_8 {dimension_numbers = #tpu.dot_dimension_numbers<[1], [0], [0], [1], [0, 0, 1, 1], [], []>} : vector<128x128xf32>, vector<128x2xf32>, vector<128x2xf32> -> vector<128x2xf32>
    %c0_9 = arith.constant 0 : index
    %c0_10 = arith.constant 0 : index
    %10 = vector.load %arg5[%c0_9, %c0_10] : memref<1x2xf32, #tpu.memory_space<vmem>>, vector<1x2xf32>
    %11 = vector.broadcast %10 : vector<1x2xf32> to vector<128x2xf32>
    %12 = arith.addf %9, %11 : vector<128x2xf32>
    %c0_11 = arith.constant 0 : index
    %c0_12 = arith.constant 0 : index
    %13 = vector.load %arg6[%c0_11, %c0_12] : memref<128x2xf32, #tpu.memory_space<vmem>>, vector<128x2xf32>
    tpu.vector_store %arg6[%c0_11, %c0_12], %12 {strides = array<i32>} : memref<128x2xf32, #tpu.memory_space<vmem>>, vector<128x2xf32>,
    return
  }
  func.func @transform_0(%arg0: i32) -> (i32, i32) {
    %c0_i32 = arith.constant 0 : i32
    %c0_i32_0 = arith.constant 0 : i32
    return %arg0, %c0_i32 : i32, i32
  }
  func.func @transform_1(%arg0: i32) -> (i32, i32) {
    %c0_i32 = arith.constant 0 : i32
    %c0_i32_0 = arith.constant 0 : i32
    %c0_i32_1 = arith.constant 0 : i32
    return %c0_i32, %c0_i32_0 : i32, i32
  }
  func.func @transform_2(%arg0: i32) -> (i32, i32) {
    %c0_i32 = arith.constant 0 : i32
    %c0_i32_0 = arith.constant 0 : i32
    %c0_i32_1 = arith.constant 0 : i32
    return %c0_i32, %c0_i32_0 : i32, i32
  }
  func.func @transform_3(%arg0: i32) -> (i32, i32) {
    %c0_i32 = arith.constant 0 : i32
    %c0_i32_0 = arith.constant 0 : i32
    %c0_i32_1 = arith.constant 0 : i32
    return %c0_i32, %c0_i32_0 : i32, i32
  }
  func.func @transform_4(%arg0: i32) -> (i32, i32) {
    %c0_i32 = arith.constant 0 : i32
    %c0_i32_0 = arith.constant 0 : i32
    %c0_i32_1 = arith.constant 0 : i32
    return %c0_i32, %c0_i32_0 : i32, i32
  }
  func.func @transform_5(%arg0: i32) -> (i32, i32) {
    %c0_i32 = arith.constant 0 : i32
    %c0_i32_0 = arith.constant 0 : i32
    return %arg0, %c0_i32 : i32, i32
  }
}

</mosaic_0001>

<llo_original>
// kernel: tpu_custom_call.1
$region0: #{tpu_custom_call.1}
  #allocation0 [shape = 'u32[]', space=smem, size = 0x4, offset = 0x4, fixed_abs, tag = 'smem constant byte address 0x4 - core index']
  #allocation1 [shape = 'u32[144,128]{1,0:T(1,128)}', space=vmem, size = 0x12000, scoped, tag = 'internal scratch']
  %s0 = inlined_call_operand.hbm [shape: bf16[256,256], index: 0, kind: input, shape index: {}]
  %s1 = inlined_call_operand.vmem [shape: bf16[256,128], index: 1, kind: input, shape index: {}]
  %s2 = inlined_call_operand.vmem [shape: f32[1,128], index: 2, kind: input, shape index: {}]
  %s3 = inlined_call_operand.vmem [shape: f32[128,2], index: 3, kind: input, shape index: {}]
  %s4 = inlined_call_operand.vmem [shape: f32[1,2], index: 4, kind: input, shape index: {}]
  %s5 = inlined_call_operand.vmem [shape: f32[256,2], index: 5, kind: output, shape index: {}]
  %s6 = sld [smem:[#allocation0]]
  $region57: #{tpu_custom_call.1} parent=0
    _
  %s8 = ssub.s32 1, %s6
  %s9 = scalar_select 0, %s8, %s6
  $region1: #{tpu_custom_call.1} parent=0
    #allocation2 [shape = 'u8[131072]{0}', space=vmem, size = 0x20000, scoped, tag = 'input window, operand 0']
    #allocation3 [shape = 's32[2]{0}', space=sflag, size = 0x8, scoped, tag = 'scoped memory for tpu_custom_call.1']
    %10 = vsyncpa [#allocation3], 0
    %s11 = scalar_lea.sflag [#allocation3], 1
    %12 = vsyncpa %s11, 0
    loop: start=0, step=1, limit=4
    $region2: #{tpu_custom_call.1} parent=1 // loop_pre_header
      _
    $region3: #{tpu_custom_call.1} parent=1 // loop_header
      %s14 = sphi 0, %s18
      %p15 = scmp.ge.s32.totalorder %s14, 4
      %s24 = sphi 0, %s26
      %s27 = sphi 0, %s24
      %s28 = sphi 0, %s27
      %s44 = sphi 0, %s28
      %s48 = sphi 0, %s48
      %s50 = sphi 0, %s48
      %s51 = sphi 0, %s50
      %s65 = sphi 0, %s51
      %s69 = sphi 0, %s69
      %s71 = sphi 0, %s69
      %s72 = sphi 0, %s71
      %s86 = sphi 0, %s72
      %s90 = sphi 0, %s90
      %s92 = sphi 0, %s90
      %s93 = sphi 0, %s92
      %s107 = sphi 0, %s93
      %s111 = sphi 0, %s111
      %s113 = sphi 0, %s111
      %s114 = sphi 0, %s113
      %s128 = sphi 0, %s114
      %s134 = sphi 0, %s136
      %s137 = sphi 0, %s134
      %s138 = sphi 0, %s137
      %s154 = sphi 0, %s138
    $region4: #{tpu_custom_call.1} parent=1 // loop_header_branch
      %17 = sbr.rel (%p15) target = $region8
    $region5: #{tpu_custom_call.1} parent=1 // loop_body
      %s19 = ssub.s32 %s14, 1
      %s20 = ssub.s32 %s14, 2
      %s21 = sadd.s32 %s14, 1
      %s22 = ssub.s32 %s14, %s21
      %p23 = scmp.eq.s32.totalorder %s22, 0
      %s25 = sadd.s32 %s24, 1
      %s26 = scalar_select %p23, %s24, %s25
      %p29 = pneg %p23
      %p30 = scmp.eq.s32.totalorder %s14, 1
      %p31 = por %p29, %p30
      %p32 = scmp.ne.s32.totalorder %s24, %s27
      %p33 = scmp.eq.s32.totalorder %s14, 0
      %p34 = por %p32, %p33
      %p35 = scmp.ne.s32.totalorder %s24, %s27
      %p36 = scmp.eq.s32.totalorder %s19, 1
      %p37 = por %p35, %p36
      %p38 = scmp.ne.s32.totalorder %s27, %s28
      %p39 = scmp.eq.s32.totalorder %s19, 0
      %p40 = por %p38, %p39
      %p41 = scmp.ne.s32.totalorder %s27, %s28
      %p42 = scmp.eq.s32.totalorder %s20, 1
      %p43 = por %p41, %p42
      %p45 = scmp.ne.s32.totalorder %s28, %s44
      %p46 = scmp.eq.s32.totalorder %s20, 0
      %p47 = por %p45, %p46
      %s49 = sadd.s32 %s48, 1
      %p52 = scmp.eq.s32.totalorder %s14, 1
      %p53 = scmp.ne.s32.totalorder %s48, %s50
      %p54 = scmp.eq.s32.totalorder %s14, 0
      %p55 = por %p53, %p54
      %p56 = scmp.ne.s32.totalorder %s48, %s50
      %p57 = scmp.eq.s32.totalorder %s19, 1
      %p58 = por %p56, %p57
      %p59 = scmp.ne.s32.totalorder %s50, %s51
      %p60 = scmp.eq.s32.totalorder %s19, 0
      %p61 = por %p59, %p60
      %p62 = scmp.ne.s32.totalorder %s50, %s51
      %p63 = scmp.eq.s32.totalorder %s20, 1
      %p64 = por %p62, %p63
      %p66 = scmp.ne.s32.totalorder %s51, %s65
      %p67 = scmp.eq.s32.totalorder %s20, 0
      %p68 = por %p66, %p67
      %s70 = sadd.s32 %s69, 1
      %p73 = scmp.eq.s32.totalorder %s14, 1
      %p74 = scmp.ne.s32.totalorder %s69, %s71
      %p75 = scmp.eq.s32.totalorder %s14, 0
      %p76 = por %p74, %p75
      %p77 = scmp.ne.s32.totalorder %s69, %s71
      %p78 = scmp.eq.s32.totalorder %s19, 1
      %p79 = por %p77, %p78
      %p80 = scmp.ne.s32.totalorder %s71, %s72
      %p81 = scmp.eq.s32.totalorder %s19, 0
      %p82 = por %p80, %p81
      %p83 = scmp.ne.s32.totalorder %s71, %s72
      %p84 = scmp.eq.s32.totalorder %s20, 1
      %p85 = por %p83, %p84
      %p87 = scmp.ne.s32.totalorder %s72, %s86
      %p88 = scmp.eq.s32.totalorder %s20, 0
      %p89 = por %p87, %p88
      %s91 = sadd.s32 %s90, 1
      %p94 = scmp.eq.s32.totalorder %s14, 1
      %p95 = scmp.ne.s32.totalorder %s90, %s92
      %p96 = scmp.eq.s32.totalorder %s14, 0
      %p97 = por %p95, %p96
      %p98 = scmp.ne.s32.totalorder %s90, %s92
      %p99 = scmp.eq.s32.totalorder %s19, 1
      %p100 = por %p98, %p99
      %p101 = scmp.ne.s32.totalorder %s92, %s93
      %p102 = scmp.eq.s32.totalorder %s19, 0
      %p103 = por %p101, %p102
      %p104 = scmp.ne.s32.totalorder %s92, %s93
      %p105 = scmp.eq.s32.totalorder %s20, 1
      %p106 = por %p104, %p105
      %p108 = scmp.ne.s32.totalorder %s93, %s107
      %p109 = scmp.eq.s32.totalorder %s20, 0
      %p110 = por %p108, %p109
      %s112 = sadd.s32 %s111, 1
      %p115 = scmp.eq.s32.totalorder %s14, 1
      %p116 = scmp.ne.s32.totalorder %s111, %s113
      %p117 = scmp.eq.s32.totalorder %s14, 0
      %p118 = por %p116, %p117
      %p119 = scmp.ne.s32.totalorder %s111, %s113
      %p120 = scmp.eq.s32.totalorder %s19, 1
      %p121 = por %p119, %p120
      %p122 = scmp.ne.s32.totalorder %s113, %s114
      %p123 = scmp.eq.s32.totalorder %s19, 0
      %p124 = por %p122, %p123
      %p125 = scmp.ne.s32.totalorder %s113, %s114
      %p126 = scmp.eq.s32.totalorder %s20, 1
      %p127 = por %p125, %p126
      %p129 = scmp.ne.s32.totalorder %s114, %s128
      %p130 = scmp.eq.s32.totalorder %s20, 0
      %p131 = por %p129, %p130
      %s132 = ssub.s32 %s14, %s21
      %p133 = scmp.eq.s32.totalorder %s132, 0
      %s135 = sadd.s32 %s134, 1
      %s136 = scalar_select %p133, %s134, %s135
      %p139 = pneg %p133
      %p140 = scmp.eq.s32.totalorder %s14, 1
      %p141 = por %p139, %p140
      %p142 = scmp.ne.s32.totalorder %s134, %s137
      %p143 = scmp.eq.s32.totalorder %s14, 0
      %p144 = por %p142, %p143
      %p145 = scmp.ne.s32.totalorder %s134, %s137
      %p146 = scmp.eq.s32.totalorder %s19, 1
      %p147 = por %p145, %p146
      %p148 = scmp.ne.s32.totalorder %s137, %s138
      %p149 = scmp.eq.s32.totalorder %s19, 0
      %p150 = por %p148, %p149
      %p151 = scmp.ne.s32.totalorder %s137, %s138
      %p152 = scmp.eq.s32.totalorder %s20, 1
      %p153 = por %p151, %p152
      %p155 = scmp.ne.s32.totalorder %s138, %s154
      %p156 = scmp.eq.s32.totalorder %s20, 0
      %p157 = por %p155, %p156
      %p158 = scmp.le.s32.totalorder 1, %s14
      %p159 = scmp.lt.s32.totalorder %s14, 3
      %p160 = pnand %p158, %p159
      %p161 = pneg %p160
      // Predicated region
      $region9: #{tpu_custom_call.1} parent=5 // pred_check
        _
      $region10: #{tpu_custom_call.1} parent=5 // pred_check_branch
        %163 = sbr.rel (%p160) target = $region12
      $region11: #{tpu_custom_call.1} parent=5 // pred_region
        %s164 = ssub.s32 %s14, 1
        // Predicated region
        $region13: #{tpu_custom_call.1} parent=11 // pred_check
          %p165 = pneg %p61
        $region14: #{tpu_custom_call.1} parent=11 // pred_check_branch
          %167 = sbr.rel (%p165) target = $region16
        $region15: #{tpu_custom_call.1} parent=11 // pred_region
          _
        $region16: #{tpu_custom_call.1} parent=11 // pred_fallthru
          _
        // Predicated region
        $region17: #{tpu_custom_call.1} parent=11 // pred_check
          %p168 = pneg %p82
        $region18: #{tpu_custom_call.1} parent=11 // pred_check_branch
          %170 = sbr.rel (%p168) target = $region20
        $region19: #{tpu_custom_call.1} parent=11 // pred_region
          _
        $region20: #{tpu_custom_call.1} parent=11 // pred_fallthru
          _
        // Predicated region
        $region21: #{tpu_custom_call.1} parent=11 // pred_check
          %p171 = pneg %p103
        $region22: #{tpu_custom_call.1} parent=11 // pred_check_branch
          %173 = sbr.rel (%p171) target = $region24
        $region23: #{tpu_custom_call.1} parent=11 // pred_region
          _
        $region24: #{tpu_custom_call.1} parent=11 // pred_fallthru
          _
        // Predicated region
        $region25: #{tpu_custom_call.1} parent=11 // pred_check
          %p174 = pneg %p124
        $region26: #{tpu_custom_call.1} parent=11 // pred_check_branch
          %176 = sbr.rel (%p174) target = $region28
        $region27: #{tpu_custom_call.1} parent=11 // pred_region
          _
        $region28: #{tpu_custom_call.1} parent=11 // pred_fallthru
          _
      $region12: #{tpu_custom_call.1} parent=5 // pred_fallthru
        _
      %p177 = scmp.lt.s32.totalorder %s14, 2
      // Predicated region
      $region29: #{tpu_custom_call.1} parent=5 // pred_check
        %p178 = pneg %p177
      $region30: #{tpu_custom_call.1} parent=5 // pred_check_branch
        %180 = sbr.rel (%p178) target = $region32
      $region31: #{tpu_custom_call.1} parent=5 // pred_region
        // Predicated region
        $region33: #{tpu_custom_call.1} parent=31 // pred_check
          %p181 = pneg %p34
        $region34: #{tpu_custom_call.1} parent=31 // pred_check_branch
          %183 = sbr.rel (%p181) target = $region36
        $region35: #{tpu_custom_call.1} parent=31 // pred_region
          %s184 = sand.u32 %s24, 1
          %s185 = scalar_lea.sflag [#allocation3], %s184
          %s186 = sand.u32 %s24, 1
          %s187 = smul.addr %s186, 128
          %s188 = scalar_lea.vmem [#allocation2], %s187
          %s189 = smul.u32 16, %s14
          %s191 = ssub.s32 2048, 2048
          %192 = vsyncadd %s185, %s191
          %s193 = smul.addr %s189, 2
          %s194 = smul.addr %s193, 64
          %s195 = scalar_lea.hbm %s0, %s194
          %s196 = sshll.u32 %s188, 4
          %s197 = int_to_ptr.vmem [resolvable:$true] %s196
          %202 = dma.hbm_to_vmem [thread:$0]  %s195, 2048, %s197, %s185, 128, 128, 8
        $region36: #{tpu_custom_call.1} parent=31 // pred_fallthru
          _
      $region32: #{tpu_custom_call.1} parent=5 // pred_fallthru
        _
      %p203 = scmp.le.s32.totalorder 1, %s14
      %p204 = scmp.lt.s32.totalorder %s14, 3
      %p205 = pnand %p203, %p204
      %p206 = pneg %p205
      // Predicated region
      $region37: #{tpu_custom_call.1} parent=5 // pred_check
        _
      $region38: #{tpu_custom_call.1} parent=5 // pred_check_branch
        %208 = sbr.rel (%p205) target = $region40
      $region39: #{tpu_custom_call.1} parent=5 // pred_region
        %s209 = ssub.s32 %s14, 1
        %s210 = sand.u32 %s27, 1
        %s211 = scalar_lea.sflag [#allocation3], %s210
        %s212 = sand.u32 %s27, 1
        %s213 = smul.addr %s212, 128
        %s214 = scalar_lea.vmem [#allocation2], %s213
        // Predicated region
        $region41: #{tpu_custom_call.1} parent=39 // pred_check
          %p215 = pneg %p40
        $region42: #{tpu_custom_call.1} parent=39 // pred_check_branch
          %217 = sbr.rel (%p215) target = $region44
        $region43: #{tpu_custom_call.1} parent=39 // pred_region
          %218 = dma.done %s211, 2048
        $region44: #{tpu_custom_call.1} parent=39 // pred_fallthru
          _
        %s219 = sand.u32 %s27, 1
        %s220 = scalar_lea.sflag [#allocation3], %s219
        %s221 = sand.u32 %s27, 1
        %s222 = smul.addr %s221, 128
        %s223 = scalar_lea.vmem [#allocation2], %s222
        %p224 = pneg %p40
        %p225 = pneg %p37
        %p226 = pneg %p61
        %p227 = pneg %p58
        %p228 = pneg %p82
        %p229 = pneg %p79
        %p230 = pneg %p103
        %p231 = pneg %p100
        %p232 = pneg %p124
        %p233 = pneg %p121
        %p234 = pneg %p150
        %p235 = pneg %p147
        %s236 = smul.u32 16, %s19
        %p237 = scmp.lt.s32.totalorder %s236, 31
        %s238 = scalar_select %p237, %s236, 31
        %s239 = smul.addr %s238, 8
        %s240 = scalar_lea.vmem %s5, %s239
        %s241 = smul.u32 16, %s19
        %s242 = smul.u32 16, %s19
        %p243 = scmp.lt.s32.totalorder %s242, 31
        %s244 = scalar_select %p243, %s242, 31
        %s245 = smul.addr %s244, 8
        %s246 = scalar_lea.vmem %s5, %s245
        %s247 = smul.u32 16, %s19
        %v249 = vld [vmem:[%s214] sm:$0xff]
        %v250 = vld [vmem:[%s214 + $0x8] sm:$0xff]
        %v251 = vld [vmem:[%s214 + $0x10] sm:$0xff]
        %v252 = vld [vmem:[%s214 + $0x18] sm:$0xff]
        %v253 = vld [vmem:[%s214 + $0x20] sm:$0xff]
        %v254 = vld [vmem:[%s214 + $0x28] sm:$0xff]
        %v255 = vld [vmem:[%s214 + $0x30] sm:$0xff]
        %v256 = vld [vmem:[%s214 + $0x38] sm:$0xff]
        %v257 = vld [vmem:[%s214 + $0x40] sm:$0xff]
        %v258 = vld [vmem:[%s214 + $0x48] sm:$0xff]
        %v259 = vld [vmem:[%s214 + $0x50] sm:$0xff]
        %v260 = vld [vmem:[%s214 + $0x58] sm:$0xff]
        %v261 = vld [vmem:[%s214 + $0x60] sm:$0xff]
        %v262 = vld [vmem:[%s214 + $0x68] sm:$0xff]
        %v263 = vld [vmem:[%s214 + $0x70] sm:$0xff]
        %v264 = vld [vmem:[%s214 + $0x78] sm:$0xff]
        %v265 = vld [vmem:[%s1] sm:$0xf]
        %v266 = vld [vmem:[%s1 + $0x4] sm:$0xf]
        %v267 = vld [vmem:[%s1 + $0x8] sm:$0xf]
        %v268 = vld [vmem:[%s1 + $0xc] sm:$0xf]
        %v269 = vld [vmem:[%s1 + $0x10] sm:$0xf]
        %v270 = vld [vmem:[%s1 + $0x14] sm:$0xf]
        %v271 = vld [vmem:[%s1 + $0x18] sm:$0xf]
        %v272 = vld [vmem:[%s1 + $0x1c] sm:$0xf]
        %v273 = vld [vmem:[%s1 + $0x20] sm:$0xf]
        %v274 = vld [vmem:[%s1 + $0x24] sm:$0xf]
        %v275 = vld [vmem:[%s1 + $0x28] sm:$0xf]
        %v276 = vld [vmem:[%s1 + $0x2c] sm:$0xf]
        %v277 = vld [vmem:[%s1 + $0x30] sm:$0xf]
        %v278 = vld [vmem:[%s1 + $0x34] sm:$0xf]
        %v279 = vld [vmem:[%s1 + $0x38] sm:$0xf]
        %v280 = vld [vmem:[%s1 + $0x3c] sm:$0xf]
        %v281 = vld [vmem:[%s1 + $0x40] sm:$0xf]
        %v282 = vld [vmem:[%s1 + $0x44] sm:$0xf]
        %v283 = vld [vmem:[%s1 + $0x48] sm:$0xf]
        %v284 = vld [vmem:[%s1 + $0x4c] sm:$0xf]
        %v285 = vld [vmem:[%s1 + $0x50] sm:$0xf]
        %v286 = vld [vmem:[%s1 + $0x54] sm:$0xf]
        %v287 = vld [vmem:[%s1 + $0x58] sm:$0xf]
        %v288 = vld [vmem:[%s1 + $0x5c] sm:$0xf]
        %v289 = vld [vmem:[%s1 + $0x60] sm:$0xf]
        %v290 = vld [vmem:[%s1 + $0x64] sm:$0xf]
        %v291 = vld [vmem:[%s1 + $0x68] sm:$0xf]
        %v292 = vld [vmem:[%s1 + $0x6c] sm:$0xf]
        %v293 = vld [vmem:[%s1 + $0x70] sm:$0xf]
        %v294 = vld [vmem:[%s1 + $0x74] sm:$0xf]
        %v295 = vld [vmem:[%s1 + $0x78] sm:$0xf]
        %v296 = vld [vmem:[%s1 + $0x7c] sm:$0xf]
        %v297 = vld [vmem:[%s2] sm:$0x1]
        %v299 = vlaneseq
        %v300 = vshrl.u32 %v299, 7
        %v301 = vsub.s32 0, %v300
        %v302 = vrot.slane %v297, %v301
        %v320 = vunpack.c.l.b16 %v249
        %v321 = vunpack.c.h.b16 %v249
        %v322 = vunpack.c.l.b16 %v250
        %v323 = vunpack.c.h.b16 %v250
        %v324 = vunpack.c.l.b16 %v251
        %v325 = vunpack.c.h.b16 %v251
        %v326 = vunpack.c.l.b16 %v252
        %v327 = vunpack.c.h.b16 %v252
        %v328 = vunpack.c.l.b16 %v253
        %v329 = vunpack.c.h.b16 %v253
        %v330 = vunpack.c.l.b16 %v254
        %v331 = vunpack.c.h.b16 %v254
        %v332 = vunpack.c.l.b16 %v255
        %v333 = vunpack.c.h.b16 %v255
        %v334 = vunpack.c.l.b16 %v256
        %v335 = vunpack.c.h.b16 %v256
        %v336 = vunpack.c.l.b16 %v257
        %v337 = vunpack.c.h.b16 %v257
        %v338 = vunpack.c.l.b16 %v258
        %v339 = vunpack.c.h.b16 %v258
        %v340 = vunpack.c.l.b16 %v259
        %v341 = vunpack.c.h.b16 %v259
        %v342 = vunpack.c.l.b16 %v260
        %v343 = vunpack.c.h.b16 %v260
        %v344 = vunpack.c.l.b16 %v261
        %v345 = vunpack.c.h.b16 %v261
        %v346 = vunpack.c.l.b16 %v262
        %v347 = vunpack.c.h.b16 %v262
        %v348 = vunpack.c.l.b16 %v263
        %v349 = vunpack.c.h.b16 %v263
        %v350 = vunpack.c.l.b16 %v264
        %v351 = vunpack.c.h.b16 %v264
        %v352 = vpack.c.b16 %v322, %v320
        %v353 = vpack.c.b16 %v323, %v321
        %v354 = vpack.c.b16 %v326, %v324
        %v355 = vpack.c.b16 %v327, %v325
        %v356 = vpack.c.b16 %v330, %v328
        %v357 = vpack.c.b16 %v331, %v329
        %v358 = vpack.c.b16 %v334, %v332
        %v359 = vpack.c.b16 %v335, %v333
        %v360 = vpack.c.b16 %v338, %v336
        %v361 = vpack.c.b16 %v339, %v337
        %v362 = vpack.c.b16 %v342, %v340
        %v363 = vpack.c.b16 %v343, %v341
        %v364 = vpack.c.b16 %v346, %v344
        %v365 = vpack.c.b16 %v347, %v345
        %v366 = vpack.c.b16 %v350, %v348
        %v367 = vpack.c.b16 %v351, %v349
        %v416 = vunpack.c.l.b16 %v265
        %v417 = vunpack.c.l.b16 %v266
        %v418 = vunpack.c.l.b16 %v267
        %v419 = vunpack.c.l.b16 %v268
        %v420 = vunpack.c.l.b16 %v269
        %v421 = vunpack.c.l.b16 %v270
        %v422 = vunpack.c.l.b16 %v271
        %v423 = vunpack.c.l.b16 %v272
        %v424 = vunpack.c.l.b16 %v273
        %v425 = vunpack.c.l.b16 %v274
        %v426 = vunpack.c.l.b16 %v275
        %v427 = vunpack.c.l.b16 %v276
        %v428 = vunpack.c.l.b16 %v277
        %v429 = vunpack.c.l.b16 %v278
        %v430 = vunpack.c.l.b16 %v279
        %v431 = vunpack.c.l.b16 %v280
        %v432 = vunpack.c.l.b16 %v281
        %v433 = vunpack.c.l.b16 %v282
        %v434 = vunpack.c.l.b16 %v283
        %v435 = vunpack.c.l.b16 %v284
        %v436 = vunpack.c.l.b16 %v285
        %v437 = vunpack.c.l.b16 %v286
        %v438 = vunpack.c.l.b16 %v287
        %v439 = vunpack.c.l.b16 %v288
        %v440 = vunpack.c.l.b16 %v289
        %v441 = vunpack.c.l.b16 %v290
        %v442 = vunpack.c.l.b16 %v291
        %v443 = vunpack.c.l.b16 %v292
        %v444 = vunpack.c.l.b16 %v293
        %v445 = vunpack.c.l.b16 %v294
        %v446 = vunpack.c.l.b16 %v295
        %v447 = vunpack.c.l.b16 %v296
        %v448 = vpack.c.b16 %v417, %v416
        %v449 = vpack.c.b16 %v419, %v418
        %v450 = vpack.c.b16 %v421, %v420
        %v451 = vpack.c.b16 %v423, %v422
        %v452 = vpack.c.b16 %v425, %v424
        %v453 = vpack.c.b16 %v427, %v426
        %v454 = vpack.c.b16 %v429, %v428
        %v455 = vpack.c.b16 %v431, %v430
        %v456 = vpack.c.b16 %v433, %v432
        %v457 = vpack.c.b16 %v435, %v434
        %v458 = vpack.c.b16 %v437, %v436
        %v459 = vpack.c.b16 %v439, %v438
        %v460 = vpack.c.b16 %v441, %v440
        %v461 = vpack.c.b16 %v443, %v442
        %v462 = vpack.c.b16 %v445, %v444
        %v463 = vpack.c.b16 %v447, %v446
        %480 = vmatprep.subr.bf16.mxu0 0
        %481 = vmatpush1.bf16.msra.mxu0 %v448
        %482 = vmatprep.subr.bf16.mxu0 0
        %483 = vmatpush1.bf16.msra.mxu0 %v449
        %484 = vmatprep.subr.bf16.mxu0 0
        %485 = vmatpush1.bf16.msra.mxu0 %v450
        %486 = vmatprep.subr.bf16.mxu0 0
        %487 = vmatpush1.bf16.msra.mxu0 %v451
        %488 = vmatprep.subr.bf16.mxu0 0
        %489 = vmatpush1.bf16.msra.mxu0 %v452
        %490 = vmatprep.subr.bf16.mxu0 0
        %491 = vmatpush1.bf16.msra.mxu0 %v453
        %492 = vmatprep.subr.bf16.mxu0 0
        %493 = vmatpush1.bf16.msra.mxu0 %v454
        %494 = vmatprep.subr.bf16.mxu0 0
        %495 = vmatpush1.bf16.msra.mxu0 %v455
        %496 = vmatprep.subr.bf16.mxu0 0
        %497 = vmatpush1.bf16.msra.mxu0 %v456
        %498 = vmatprep.subr.bf16.mxu0 0
        %499 = vmatpush1.bf16.msra.mxu0 %v457
        %500 = vmatprep.subr.bf16.mxu0 0
        %501 = vmatpush1.bf16.msra.mxu0 %v458
        %502 = vmatprep.subr.bf16.mxu0 0
        %503 = vmatpush1.bf16.msra.mxu0 %v459
        %504 = vmatprep.subr.bf16.mxu0 0
        %505 = vmatpush1.bf16.msra.mxu0 %v460
        %506 = vmatprep.subr.bf16.mxu0 0
        %507 = vmatpush1.bf16.msra.mxu0 %v461
        %508 = vmatprep.subr.bf16.mxu0 0
        %509 = vmatpush1.bf16.msra.mxu0 %v462
        %510 = vmatprep.subr.bf16.mxu0 0
        %511 = vmatpush1.bf16.msra.mxu0 %v463
        %512 = vmatprep.mubr.bf16.mxu0 %v353
        %513 = vmatmul.mubr.bf16.gmra.mrb[0].mxu0 %v352
        %v514 = vpop.f32.mrb[0].mxu0
        %v515 = vadd.f32 %v302, %v514
        %v516 = vpop.f32.mrb[0].mxu0
        %v517 = vpop.f32.mrb[0].mxu0
        %v518 = vadd.f32 %v302, %v517
        %v519 = vpop.f32.mrb[0].mxu0
        %520 = vmatprep.mubr.bf16.mxu0 %v355
        %521 = vmatmul.mubr.bf16.gmra.mrb[0].mxu0 %v354
        %v522 = vpop.f32.mrb[0].mxu0
        %v523 = vadd.f32 %v302, %v522
        %v524 = vpop.f32.mrb[0].mxu0
        %v525 = vpop.f32.mrb[0].mxu0
        %v526 = vadd.f32 %v302, %v525
        %v527 = vpop.f32.mrb[0].mxu0
        %528 = vmatprep.mubr.bf16.mxu0 %v357
        %529 = vmatmul.mubr.bf16.gmra.mrb[0].mxu0 %v356
        %v530 = vpop.f32.mrb[0].mxu0
        %v531 = vadd.f32 %v302, %v530
        %v532 = vpop.f32.mrb[0].mxu0
        %v533 = vpop.f32.mrb[0].mxu0
        %v534 = vadd.f32 %v302, %v533
        %v535 = vpop.f32.mrb[0].mxu0
        %536 = vmatprep.mubr.bf16.mxu0 %v359
        %537 = vmatmul.mubr.bf16.gmra.mrb[0].mxu0 %v358
        %v538 = vpop.f32.mrb[0].mxu0
        %v539 = vadd.f32 %v302, %v538
        %v540 = vpop.f32.mrb[0].mxu0
        %v541 = vpop.f32.mrb[0].mxu0
        %v542 = vadd.f32 %v302, %v541
        %v543 = vpop.f32.mrb[0].mxu0
        %544 = vmatprep.mubr.bf16.mxu0 %v361
        %545 = vmatmul.mubr.bf16.gmra.mrb[0].mxu0 %v360
        %v546 = vpop.f32.mrb[0].mxu0
        %v547 = vadd.f32 %v302, %v546
        %v548 = vpop.f32.mrb[0].mxu0
        %v549 = vpop.f32.mrb[0].mxu0
        %v550 = vadd.f32 %v302, %v549
        %v551 = vpop.f32.mrb[0].mxu0
        %552 = vmatprep.mubr.bf16.mxu0 %v363
        %553 = vmatmul.mubr.bf16.gmra.mrb[0].mxu0 %v362
        %v554 = vpop.f32.mrb[0].mxu0
        %v555 = vadd.f32 %v302, %v554
        %v556 = vpop.f32.mrb[0].mxu0
        %v557 = vpop.f32.mrb[0].mxu0
        %v558 = vadd.f32 %v302, %v557
        %v559 = vpop.f32.mrb[0].mxu0
        %560 = vmatprep.mubr.bf16.mxu0 %v365
        %561 = vmatmul.mubr.bf16.gmra.mrb[0].mxu0 %v364
        %v562 = vpop.f32.mrb[0].mxu0
        %v563 = vadd.f32 %v302, %v562
        %v564 = vpop.f32.mrb[0].mxu0
        %v565 = vpop.f32.mrb[0].mxu0
        %v566 = vadd.f32 %v302, %v565
        %v567 = vpop.f32.mrb[0].mxu0
        %568 = vmatprep.mubr.bf16.mxu0 %v367
        %569 = vmatmul.mubr.bf16.gmra.mrb[0].mxu0 %v366
        %v570 = vpop.f32.mrb[0].mxu0
        %v571 = vadd.f32 %v302, %v570
        %v572 = vpop.f32.mrb[0].mxu0
        %v573 = vpop.f32.mrb[0].mxu0
        %v574 = vadd.f32 %v302, %v573
        %v575 = vpop.f32.mrb[0].mxu0
        %576 = vdwg.mxu0
        %v577 = vmax.f32 %v515, 0.0
        %v578 = vmax.f32 %v518, 0.0
        %v579 = vmax.f32 %v523, 0.0
        %v580 = vmax.f32 %v526, 0.0
        %v581 = vmax.f32 %v531, 0.0
        %v582 = vmax.f32 %v534, 0.0
        %v583 = vmax.f32 %v539, 0.0
        %v584 = vmax.f32 %v542, 0.0
        %v585 = vmax.f32 %v547, 0.0
        %v586 = vmax.f32 %v550, 0.0
        %v587 = vmax.f32 %v555, 0.0
        %v588 = vmax.f32 %v558, 0.0
        %v589 = vmax.f32 %v563, 0.0
        %v590 = vmax.f32 %v566, 0.0
        %v591 = vmax.f32 %v571, 0.0
        %v592 = vmax.f32 %v574, 0.0
        %v593 = vld [vmem:[%s3] sm:$0xff]
        %v594 = vld [vmem:[%s3 + $0x8] sm:$0xff]
        %v595 = vld [vmem:[%s3 + $0x10] sm:$0xff]
        %v596 = vld [vmem:[%s3 + $0x18] sm:$0xff]
        %v597 = vld [vmem:[%s3 + $0x20] sm:$0xff]
        %v598 = vld [vmem:[%s3 + $0x28] sm:$0xff]
        %v599 = vld [vmem:[%s3 + $0x30] sm:$0xff]
        %v600 = vld [vmem:[%s3 + $0x38] sm:$0xff]
        %v601 = vld [vmem:[%s3 + $0x40] sm:$0xff]
        %v602 = vld [vmem:[%s3 + $0x48] sm:$0xff]
        %v603 = vld [vmem:[%s3 + $0x50] sm:$0xff]
        %v604 = vld [vmem:[%s3 + $0x58] sm:$0xff]
        %v605 = vld [vmem:[%s3 + $0x60] sm:$0xff]
        %v606 = vld [vmem:[%s3 + $0x68] sm:$0xff]
        %v607 = vld [vmem:[%s3 + $0x70] sm:$0xff]
        %v608 = vld [vmem:[%s3 + $0x78] sm:$0xff]
        %v609 = vld [vmem:[%s4] sm:$0x1]
        %v611 = vlaneseq
        %v612 = vshrl.u32 %v611, 7
        %v613 = vsub.s32 0, %v612
        %v614 = vrot.slane %v609, %v613
        %616 = vmatprep.subr.mxu0 0.0
        %617 = vmatpush1.msra.mxu0 %v593
        %618 = vmatprep.subr.mxu0 0.0
        %619 = vmatpush1.msra.mxu0 %v594
        %620 = vmatprep.subr.mxu0 0.0
        %621 = vmatpush1.msra.mxu0 %v595
        %622 = vmatprep.subr.mxu0 0.0
        %623 = vmatpush1.msra.mxu0 %v596
        %624 = vmatprep.subr.mxu0 0.0
        %625 = vmatpush1.msra.mxu0 %v597
        %626 = vmatprep.subr.mxu0 0.0
        %627 = vmatpush1.msra.mxu0 %v598
        %628 = vmatprep.subr.mxu0 0.0
        %629 = vmatpush1.msra.mxu0 %v599
        %630 = vmatprep.subr.mxu0 0.0
        %631 = vmatpush1.msra.mxu0 %v600
        %632 = vmatprep.subr.mxu0 0.0
        %633 = vmatpush1.msra.mxu0 %v601
        %634 = vmatprep.subr.mxu0 0.0
        %635 = vmatpush1.msra.mxu0 %v602
        %636 = vmatprep.subr.mxu0 0.0
        %637 = vmatpush1.msra.mxu0 %v603
        %638 = vmatprep.subr.mxu0 0.0
        %639 = vmatpush1.msra.mxu0 %v604
        %640 = vmatprep.subr.mxu0 0.0
        %641 = vmatpush1.msra.mxu0 %v605
        %642 = vmatprep.subr.mxu0 0.0
        %643 = vmatpush1.msra.mxu0 %v606
        %644 = vmatprep.subr.mxu0 0.0
        %645 = vmatpush1.msra.mxu0 %v607
        %646 = vmatprep.subr.mxu0 0.0
        %647 = vmatpush1.msra.mxu0 %v608
        %648 = vmatprep.subr.mxu0 0.0
        %649 = vmatpush1.msra.mxu0 0.0
        %650 = vmatprep.subr.mxu0 0.0
        %651 = vmatpush1.msra.mxu0 0.0
        %652 = vmatprep.subr.mxu0 0.0
        %653 = vmatpush1.msra.mxu0 0.0
        %654 = vmatprep.subr.mxu0 0.0
        %655 = vmatpush1.msra.mxu0 0.0
        %656 = vmatprep.subr.mxu0 0.0
        %657 = vmatpush1.msra.mxu0 0.0
        %658 = vmatprep.subr.mxu0 0.0
        %659 = vmatpush1.msra.mxu0 0.0
        %660 = vmatprep.subr.mxu0 0.0
        %661 = vmatpush1.msra.mxu0 0.0
        %662 = vmatprep.subr.mxu0 0.0
        %663 = vmatpush1.msra.mxu0 0.0
        %664 = vmatprep.subr.mxu0 0.0
        %665 = vmatpush1.msra.mxu0 0.0
        %666 = vmatprep.subr.mxu0 0.0
        %667 = vmatpush1.msra.mxu0 0.0
        %668 = vmatprep.subr.mxu0 0.0
        %669 = vmatpush1.msra.mxu0 0.0
        %670 = vmatprep.subr.mxu0 0.0
        %671 = vmatpush1.msra.mxu0 0.0
        %672 = vmatprep.subr.mxu0 0.0
        %673 = vmatpush1.msra.mxu0 0.0
        %674 = vmatprep.subr.mxu0 0.0
        %675 = vmatpush1.msra.mxu0 0.0
        %676 = vmatprep.subr.mxu0 0.0
        %677 = vmatpush1.msra.mxu0 0.0
        %678 = vmatprep.subr.mxu0 0.0
        %679 = vmatpush1.msra.mxu0 0.0
        %680 = vmatprep.mubr.f32.mxu0 0.0
        %681 = vmatmul.mubr.f32.gmra.mrb[0].mxu0 %v577
        %v682 = vpop.f32.mrb[0].mxu0
        %v683 = vadd.f32 %v614, %v682
        %v684 = vpop.f32.mrb[0].mxu0
        %685 = vmatprep.mubr.f32.mxu0 0.0
        %686 = vmatmul.mubr.f32.gmra.mrb[0].mxu0 %v578
        %v687 = vpop.f32.mrb[0].mxu0
        %v688 = vadd.f32 %v614, %v687
        %v689 = vpop.f32.mrb[0].mxu0
        %690 = vmatprep.mubr.f32.mxu0 0.0
        %691 = vmatmul.mubr.f32.gmra.mrb[0].mxu0 %v579
        %v692 = vpop.f32.mrb[0].mxu0
        %v693 = vadd.f32 %v614, %v692
        %v694 = vpop.f32.mrb[0].mxu0
        %695 = vmatprep.mubr.f32.mxu0 0.0
        %696 = vmatmul.mubr.f32.gmra.mrb[0].mxu0 %v580
        %v697 = vpop.f32.mrb[0].mxu0
        %v698 = vadd.f32 %v614, %v697
        %v699 = vpop.f32.mrb[0].mxu0
        %700 = vmatprep.mubr.f32.mxu0 0.0
        %701 = vmatmul.mubr.f32.gmra.mrb[0].mxu0 %v581
        %v702 = vpop.f32.mrb[0].mxu0
        %v703 = vadd.f32 %v614, %v702
        %v704 = vpop.f32.mrb[0].mxu0
        %705 = vmatprep.mubr.f32.mxu0 0.0
        %706 = vmatmul.mubr.f32.gmra.mrb[0].mxu0 %v582
        %v707 = vpop.f32.mrb[0].mxu0
        %v708 = vadd.f32 %v614, %v707
        %v709 = vpop.f32.mrb[0].mxu0
        %710 = vmatprep.mubr.f32.mxu0 0.0
        %711 = vmatmul.mubr.f32.gmra.mrb[0].mxu0 %v583
        %v712 = vpop.f32.mrb[0].mxu0
        %v713 = vadd.f32 %v614, %v712
        %v714 = vpop.f32.mrb[0].mxu0
        %715 = vmatprep.mubr.f32.mxu0 0.0
        %716 = vmatmul.mubr.f32.gmra.mrb[0].mxu0 %v584
        %v717 = vpop.f32.mrb[0].mxu0
        %v718 = vadd.f32 %v614, %v717
        %v719 = vpop.f32.mrb[0].mxu0
        %720 = vmatprep.mubr.f32.mxu0 0.0
        %721 = vmatmul.mubr.f32.gmra.mrb[0].mxu0 %v585
        %v722 = vpop.f32.mrb[0].mxu0
        %v723 = vadd.f32 %v614, %v722
        %v724 = vpop.f32.mrb[0].mxu0
        %725 = vmatprep.mubr.f32.mxu0 0.0
        %726 = vmatmul.mubr.f32.gmra.mrb[0].mxu0 %v586
        %v727 = vpop.f32.mrb[0].mxu0
        %v728 = vadd.f32 %v614, %v727
        %v729 = vpop.f32.mrb[0].mxu0
        %730 = vmatprep.mubr.f32.mxu0 0.0
        %731 = vmatmul.mubr.f32.gmra.mrb[0].mxu0 %v587
        %v732 = vpop.f32.mrb[0].mxu0
        %v733 = vadd.f32 %v614, %v732
        %v734 = vpop.f32.mrb[0].mxu0
        %735 = vmatprep.mubr.f32.mxu0 0.0
        %736 = vmatmul.mubr.f32.gmra.mrb[0].mxu0 %v588
        %v737 = vpop.f32.mrb[0].mxu0
        %v738 = vadd.f32 %v614, %v737
        %v739 = vpop.f32.mrb[0].mxu0
        %740 = vmatprep.mubr.f32.mxu0 0.0
        %741 = vmatmul.mubr.f32.gmra.mrb[0].mxu0 %v589
        %v742 = vpop.f32.mrb[0].mxu0
        %v743 = vadd.f32 %v614, %v742
        %v744 = vpop.f32.mrb[0].mxu0
        %745 = vmatprep.mubr.f32.mxu0 0.0
        %746 = vmatmul.mubr.f32.gmra.mrb[0].mxu0 %v590
        %v747 = vpop.f32.mrb[0].mxu0
        %v748 = vadd.f32 %v614, %v747
        %v749 = vpop.f32.mrb[0].mxu0
        %750 = vmatprep.mubr.f32.mxu0 0.0
        %751 = vmatmul.mubr.f32.gmra.mrb[0].mxu0 %v591
        %v752 = vpop.f32.mrb[0].mxu0
        %v753 = vadd.f32 %v614, %v752
        %v754 = vpop.f32.mrb[0].mxu0
        %755 = vmatprep.mubr.f32.mxu0 0.0
        %756 = vmatmul.mubr.f32.gmra.mrb[0].mxu0 %v592
        %v757 = vpop.f32.mrb[0].mxu0
        %v758 = vadd.f32 %v614, %v757
        %v759 = vpop.f32.mrb[0].mxu0
        %760 = vdwg.mxu0
        %vm761 = vcmask 15360
        %762 = vst.msk [vmem:[%s246] sm:$0xff] %vm761, %v683
        %763 = vst.msk [vmem:[%s246 + $0x8] sm:$0xff] %vm761, %v688
        %764 = vst.msk [vmem:[%s246 + $0x10] sm:$0xff] %vm761, %v693
        %765 = vst.msk [vmem:[%s246 + $0x18] sm:$0xff] %vm761, %v698
        %766 = vst.msk [vmem:[%s246 + $0x20] sm:$0xff] %vm761, %v703
        %767 = vst.msk [vmem:[%s246 + $0x28] sm:$0xff] %vm761, %v708
        %768 = vst.msk [vmem:[%s246 + $0x30] sm:$0xff] %vm761, %v713
        %769 = vst.msk [vmem:[%s246 + $0x38] sm:$0xff] %vm761, %v718
        %770 = vst.msk [vmem:[%s246 + $0x40] sm:$0xff] %vm761, %v723
        %771 = vst.msk [vmem:[%s246 + $0x48] sm:$0xff] %vm761, %v728
        %772 = vst.msk [vmem:[%s246 + $0x50] sm:$0xff] %vm761, %v733
        %773 = vst.msk [vmem:[%s246 + $0x58] sm:$0xff] %vm761, %v738
        %774 = vst.msk [vmem:[%s246 + $0x60] sm:$0xff] %vm761, %v743
        %775 = vst.msk [vmem:[%s246 + $0x68] sm:$0xff] %vm761, %v748
        %776 = vst.msk [vmem:[%s246 + $0x70] sm:$0xff] %vm761, %v753
        %777 = vst.msk [vmem:[%s246 + $0x78] sm:$0xff] %vm761, %v758
        %s778 = smul.u32 16, %s19
        %p779 = scmp.lt.s32.totalorder %s778, 31
        %s780 = scalar_select %p779, %s778, 31
        %s781 = smul.addr %s780, 8
        %s782 = scalar_lea.vmem %s5, %s781
        // Predicated region
        $region45: #{tpu_custom_call.1} parent=39 // pred_check
          %p783 = pneg %p147
        $region46: #{tpu_custom_call.1} parent=39 // pred_check_branch
          %785 = sbr.rel (%p783) target = $region48
        $region47: #{tpu_custom_call.1} parent=39 // pred_region
          %s786 = smul.u32 16, %s19
        $region48: #{tpu_custom_call.1} parent=39 // pred_fallthru
          _
      $region40: #{tpu_custom_call.1} parent=5 // pred_fallthru
        _
      %p787 = scmp.le.s32.totalorder 2, %s14
      // Predicated region
      $region49: #{tpu_custom_call.1} parent=5 // pred_check
        %p788 = pneg %p787
      $region50: #{tpu_custom_call.1} parent=5 // pred_check_branch
        %790 = sbr.rel (%p788) target = $region52
      $region51: #{tpu_custom_call.1} parent=5 // pred_region
        %s791 = ssub.s32 %s14, 2
        // Predicated region
        $region53: #{tpu_custom_call.1} parent=51 // pred_check
          %p792 = pneg %p153
        $region54: #{tpu_custom_call.1} parent=51 // pred_check_branch
          %794 = sbr.rel (%p792) target = $region56
        $region55: #{tpu_custom_call.1} parent=51 // pred_region
          %s795 = smul.u32 16, %s20
          %p796 = scmp.lt.s32.totalorder %s795, 31
          %s797 = scalar_select %p796, %s795, 31
          %s798 = smul.addr %s797, 8
          %s799 = scalar_lea.vmem %s5, %s798
        $region56: #{tpu_custom_call.1} parent=51 // pred_fallthru
          _
      $region52: #{tpu_custom_call.1} parent=5 // pred_fallthru
        _
    $region6: #{tpu_custom_call.1} parent=1 // loop_footer
      %s18 = sadd.s32 1, %s14
    $region7: #{tpu_custom_call.1} parent=1 // loop_footer_branch
      %13 = sbr.rel target = $region3
    $region8: #{tpu_custom_call.1} parent=1 // loop_exit
      _
    %800 = vsyncpa [#allocation3], 1
    %s801 = scalar_lea.sflag [#allocation3], 1
    %802 = vsyncpa %s801, 1

</llo_original>
